<compile_context>
chip_gen: v7x
topology: tpu7x:2x2x1
jax: 0.10.0
libtpu: 0.0.40
codegen_flags: <defaults>
</compile_context>

<pallas_src>
import jax
import jax.numpy as jnp
from jax.experimental import pallas as pl
from jax.experimental.pallas import tpu as pltpu

BN_EPS = 1e-5
_VMEM_LIMIT = 48 * 1024 * 1024     # > v5e(16)/v6e(32) scoped defaults, < v7x 64 MiB physical
_BLOCK_BUDGET = 2 * 1024 * 1024    # target bytes of x+out per grid step


def _pick_nb(n, bytes_per_batch_elem):
    """Largest divisor of n whose per-step block stays under the VMEM budget."""
    nb = 1
    for d in range(1, n + 1):
        if n % d == 0 and d * bytes_per_batch_elem <= _BLOCK_BUDGET:
            nb = d
    return nb


def _stacked_taps(xt, c_in, length):
    """(C_in, L) -> (3*C_in, L) rows [x[l-1]; x[l]; x[l+1]] with zero conv halo."""
    zcol = jnp.zeros((c_in, 1), xt.dtype)
    x_prev = jnp.concatenate([zcol, xt[:, : length - 1]], axis=1)   # x[l-1]
    x_next = jnp.concatenate([xt[:, 1:], zcol], axis=1)             # x[l+1]
    return jnp.concatenate([x_prev, xt, x_next], axis=0)


def conv_trans_bn(x, weight, bias, gamma, beta):
    """x: (N, C_in, L) f32; weight: (C_out, C_in, 3); returns (N, C_out, L) f32."""
    # Conv bias adds a per-channel constant; training-mode BatchNorm removes the
    # per-channel mean again, so the bias cancels exactly:
    #   out = conv*scale + (beta - mean_conv*scale),  scale = gamma*rsqrt(var+eps)
    del bias
    n, c_in, length = x.shape
    c_out, _, k = weight.shape
    assert k == 3 and length >= 2

    # (C_out, 3*C_in) with columns ordered [tap0 block | tap1 block | tap2 block]
    w_fused = jnp.transpose(weight, (0, 2, 1)).reshape(c_out, 3 * c_in)
    w_fused = w_fused.astype(jnp.float32)
    gb = jnp.stack([gamma, beta]).reshape(2, c_out, 1).astype(jnp.float32)

    nb = _pick_nb(n, (c_in + c_out) * length * 4)
    steps = n // nb
    inv_count = 1.0 / float(n * length)
    conv_flops = 2 * n * length * (3 * c_in) * c_out

    # ---------------- pass 1: batch statistics -> (scale, shift) ----------------
    def stats_kernel(x_ref, w_ref, gb_ref, ss_ref):
        i = pl.program_id(0)

        @pl.when(i == 0)
        def _init():
            ss_ref[...] = jnp.zeros_like(ss_ref)

        s = jnp.zeros((c_out, 1), jnp.float32)
        q = jnp.zeros((c_out, 1), jnp.float32)
        for b in range(nb):                       # static unroll over the batch block
            y = jnp.dot(w_ref[...], _stacked_taps(x_ref[b], c_in, length),
                        preferred_element_type=jnp.float32)          # (C_out, L)
            s = s + jnp.sum(y, axis=1, keepdims=True)
            q = q + jnp.sum(y * y, axis=1, keepdims=True)
        ss_ref[0] += s
        ss_ref[1] += q

        @pl.when(i == pl.num_programs(0) - 1)
        def _finalize():
            mean = ss_ref[0] * inv_count
            # TODO(synk): E[y^2]-E[y]^2 loses precision for very large N*L; a
            # shifted / Welford-style accumulation would be more robust at scale.
            var = jnp.maximum(ss_ref[1] * inv_count - mean * mean, 0.0)
            scale = gb_ref[0] * jax.lax.rsqrt(var + BN_EPS)
            ss_ref[0] = scale
            ss_ref[1] = gb_ref[1] - mean * scale

    scale_shift = pl.pallas_call(
        stats_kernel,
        out_shape=jax.ShapeDtypeStruct((2, c_out, 1), jnp.float32),
        grid=(steps,),
        in_specs=[
            pl.BlockSpec((nb, c_in, length), lambda i: (i, 0, 0)),
            pl.BlockSpec((c_out, 3 * c_in), lambda i: (0, 0)),
            pl.BlockSpec((2, c_out, 1), lambda i: (0, 0, 0)),
        ],
        out_specs=pl.BlockSpec((2, c_out, 1), lambda i: (0, 0, 0)),
        compiler_params=pltpu.CompilerParams(
            dimension_semantics=("arbitrary",),          # sequential accumulation
            vmem_limit_bytes=_VMEM_LIMIT),
        cost_estimate=pl.CostEstimate(
            flops=conv_flops + 4 * n * length * c_out,
            transcendentals=c_out,
            bytes_accessed=4 * (x.size + w_fused.size + gb.size + 2 * c_out)),
    )(x, w_fused, gb)

    # ---------------- pass 2: conv + per-channel FMA + ReLU ----------------
    def norm_kernel(ss_ref, x_ref, w_ref, o_ref):
        scale = ss_ref[0]                                            # (C_out, 1)
        shift = ss_ref[1]
        for b in range(nb):
            y = jnp.dot(w_ref[...], _stacked_taps(x_ref[b], c_in, length),
                        preferred_element_type=jnp.float32)          # (C_out, L)
            o_ref[b] = jnp.maximum(y * scale + shift, 0.0)

    out = pl.pallas_call(
        norm_kernel,
        out_shape=jax.ShapeDtypeStruct((n, c_out, length), jnp.float32),
        grid=(steps,),
        in_specs=[
            pl.BlockSpec((2, c_out, 1), lambda i: (0, 0, 0)),
            pl.BlockSpec((nb, c_in, length), lambda i: (i, 0, 0)),
            pl.BlockSpec((c_out, 3 * c_in), lambda i: (0, 0)),
        ],
        out_specs=pl.BlockSpec((nb, c_out, length), lambda i: (i, 0, 0)),
        compiler_params=pltpu.CompilerParams(
            dimension_semantics=("parallel",),   # batch steps independent (v7x 2 TCs)
            vmem_limit_bytes=_VMEM_LIMIT),
        cost_estimate=pl.CostEstimate(
            flops=conv_flops + 3 * n * length * c_out,
            transcendentals=0,
            bytes_accessed=4 * (x.size + w_fused.size + 2 * c_out
                                + n * c_out * length)),
    )(scale_shift, x, w_fused)

    return out


def _reference(x, weight, bias, gamma, beta):
    # Pure-JAX reference: conv1d(k=3, pad=1) + training-mode BN + ReLU.
    y = jax.lax.conv_general_dilated(
        x, weight, window_strides=(1,), padding=((1, 1),),
        dimension_numbers=("NCH", "OIH", "NCH"))
    y = y + bias[None, :, None]
    mean = jnp.mean(y, axis=(0, 2), keepdims=True)
    var = jnp.mean((y - mean) ** 2, axis=(0, 2), keepdims=True)
    y = (y - mean) * jax.lax.rsqrt(var + BN_EPS)
    y = y * gamma[None, :, None] + beta[None, :, None]
    return jnp.maximum(y, 0.0)


if __name__ == "__main__":
    key = jax.random.PRNGKey(0)
    k_x, k_w, k_b, k_g, k_be = jax.random.split(key, 5)

    N, C_IN, C_OUT, L = 2, 4, 8, 16
    x = jax.random.normal(k_x, (N, C_IN, L), dtype=jnp.float32)

    # deterministic synthetic parameters (shapes from nn.Conv1d / nn.BatchNorm1d)
    weight = jax.random.normal(k_w, (C_OUT, C_IN, 3), dtype=jnp.float32) * 0.1
    bias = jax.random.normal(k_b, (C_OUT,), dtype=jnp.float32) * 0.1
    gamma = 1.0 + 0.1 * jax.random.normal(k_g, (C_OUT,), dtype=jnp.float32)
    beta = 0.1 * jax.random.normal(k_be, (C_OUT,), dtype=jnp.float32)

    out = conv_trans_bn(x, weight, bias, gamma, beta)
    jax.block_until_ready(out)

    ref = _reference(x, weight, bias, gamma, beta)
    assert out.shape == (N, C_OUT, L)
    assert jnp.allclose(out, ref, atol=1e-4, rtol=1e-4), "mismatch vs reference"

    print("KERNEL_OK")
</pallas_src>

<mosaic_0001>
module attributes {stable_mosaic.version = 11 : i64} {
  func.func @stats_kernel(%arg0: i32, %arg1: memref<2x4x16xf32, #tpu.memory_space<vmem>>, %arg2: memref<8x12xf32, #tpu.memory_space<vmem>>, %arg3: memref<2x8x1xf32, #tpu.memory_space<vmem>>, %arg4: memref<2x8x1xf32, #tpu.memory_space<vmem>>) attributes {dimension_semantics = [#tpu.dimension_semantics<arbitrary>], iteration_bounds = array<i64: 1>, scalar_prefetch = 0 : i64, scratch_operands = 0 : i64, tpu.core_type = #tpu.core_type<tc>, window_params = [{transform_indices = @transform_0, window_bounds = array<i64: 2, 4, 16>}, {pipeline_mode = #tpu.pipeline_mode<synchronous>, transform_indices = @transform_1, window_bounds = array<i64: 8, 12>}, {pipeline_mode = #tpu.pipeline_mode<synchronous>, transform_indices = @transform_2, window_bounds = array<i64: 2, 8, 1>}, {pipeline_mode = #tpu.pipeline_mode<synchronous>, transform_indices = @transform_3, window_bounds = array<i64: 2, 8, 1>}]} {
    %c0_i32 = arith.constant 0 : i32
    %0 = arith.cmpi eq, %arg0, %c0_i32 : i32
    %1 = arith.extui %0 : i1 to i32
    %c0_i32_0 = arith.constant 0 : i32
    %2 = arith.cmpi ne, %1, %c0_i32_0 : i32
    scf.if %2 {
      %cst_32 = arith.constant 0.000000e+00 : f32
      %54 = vector.broadcast %cst_32 : f32 to vector<2x8x1xf32>
      %c0_33 = arith.constant 0 : index
      %c0_34 = arith.constant 0 : index
      %c0_35 = arith.constant 0 : index
      %55 = vector.load %arg4[%c0_33, %c0_34, %c0_35] : memref<2x8x1xf32, #tpu.memory_space<vmem>>, vector<2x8x1xf32>
      tpu.vector_store %arg4[%c0_33, %c0_34, %c0_35], %54 {strides = array<i32>} : memref<2x8x1xf32, #tpu.memory_space<vmem>>, vector<2x8x1xf32>,
    } else {
    }
    %cst = arith.constant 0.000000e+00 : f32
    %3 = vector.broadcast %cst : f32 to vector<8x1xf32>
    %cst_1 = arith.constant 0.000000e+00 : f32
    %4 = vector.broadcast %cst_1 : f32 to vector<8x1xf32>
    %c0 = arith.constant 0 : index
    %c0_2 = arith.constant 0 : index
    %5 = vector.load %arg2[%c0, %c0_2] : memref<8x12xf32, #tpu.memory_space<vmem>>, vector<8x12xf32>
    %c0_3 = arith.constant 0 : index
    %c0_4 = arith.constant 0 : index
    %c0_5 = arith.constant 0 : index
    %6 = vector.load %arg1[%c0_3, %c0_4, %c0_5] : memref<2x4x16xf32, #tpu.memory_space<vmem>>, vector<1x4x16xf32>
    %7 = vector.shape_cast %6 : vector<1x4x16xf32> to vector<4x16xf32>
    %cst_6 = arith.constant 0.000000e+00 : f32
    %8 = vector.broadcast %cst_6 : f32 to vector<4x1xf32>
    %9 = vector.extract_strided_slice %7 {offsets = [0, 0], sizes = [4, 15], strides = [1, 1]} : vector<4x16xf32> to vector<4x15xf32>
    %10 = tpu.concatenate %8, %9 in 1 : vector<4x1xf32>, vector<4x15xf32> -> vector<4x16xf32>
    %11 = vector.extract_strided_slice %7 {offsets = [0, 1], sizes = [4, 15], strides = [1, 1]} : vector<4x16xf32> to vector<4x15xf32>
    %12 = tpu.concatenate %11, %8 in 1 : vector<4x15xf32>, vector<4x1xf32> -> vector<4x16xf32>
    %13 = tpu.concatenate %10, %7, %12 in 0 : vector<4x16xf32>, vector<4x16xf32>, vector<4x16xf32> -> vector<12x16xf32>
    %cst_7 = arith.constant dense<0.000000e+00> : vector<8x16xf32>
    %14 = tpu.matmul %5, %13, %cst_7 {dimension_numbers = #tpu.dot_dimension_numbers<[1], [0], [0], [1], [0, 0, 1, 1], [], []>} : vector<8x12xf32>, vector<12x16xf32>, vector<8x16xf32> -> vector<8x16xf32>
    %cst_8 = arith.constant dense<0.000000e+00> : vector<8xf32>
    %15 = vector.multi_reduction <add>, %14, %cst_8 [1] : vector<8x16xf32> to vector<8xf32>
    %16 = vector.shape_cast %15 : vector<8xf32> to vector<8x1xf32>
    %17 = arith.addf %3, %16 : vector<8x1xf32>
    %18 = arith.mulf %14, %14 : vector<8x16xf32>
    %cst_9 = arith.constant dense<0.000000e+00> : vector<8xf32>
    %19 = vector.multi_reduction <add>, %18, %cst_9 [1] : vector<8x16xf32> to vector<8xf32>
    %20 = vector.shape_cast %19 : vector<8xf32> to vector<8x1xf32>
    %21 = arith.addf %4, %20 : vector<8x1xf32>
    %c0_10 = arith.constant 0 : index
    %c0_11 = arith.constant 0 : index
    %22 = vector.load %arg2[%c0_10, %c0_11] : memref<8x12xf32, #tpu.memory_space<vmem>>, vector<8x12xf32>
    %c1 = arith.constant 1 : index
    %c0_12 = arith.constant 0 : index
    %c0_13 = arith.constant 0 : index
    %23 = vector.load %arg1[%c1, %c0_12, %c0_13] : memref<2x4x16xf32, #tpu.memory_space<vmem>>, vector<1x4x16xf32>
    %24 = vector.shape_cast %23 : vector<1x4x16xf32> to vector<4x16xf32>
    %cst_14 = arith.constant 0.000000e+00 : f32
    %25 = vector.broadcast %cst_14 : f32 to vector<4x1xf32>
    %26 = vector.extract_strided_slice %24 {offsets = [0, 0], sizes = [4, 15], strides = [1, 1]} : vector<4x16xf32> to vector<4x15xf32>
    %27 = tpu.concatenate %25, %26 in 1 : vector<4x1xf32>, vector<4x15xf32> -> vector<4x16xf32>
    %28 = vector.extract_strided_slice %24 {offsets = [0, 1], sizes = [4, 15], strides = [1, 1]} : vector<4x16xf32> to vector<4x15xf32>
    %29 = tpu.concatenate %28, %25 in 1 : vector<4x15xf32>, vector<4x1xf32> -> vector<4x16xf32>
    %30 = tpu.concatenate %27, %24, %29 in 0 : vector<4x16xf32>, vector<4x16xf32>, vector<4x16xf32> -> vector<12x16xf32>
    %cst_15 = arith.constant dense<0.000000e+00> : vector<8x16xf32>
    %31 = tpu.matmul %22, %30, %cst_15 {dimension_numbers = #tpu.dot_dimension_numbers<[1], [0], [0], [1], [0, 0, 1, 1], [], []>} : vector<8x12xf32>, vector<12x16xf32>, vector<8x16xf32> -> vector<8x16xf32>
    %cst_16 = arith.constant dense<0.000000e+00> : vector<8xf32>
    %32 = vector.multi_reduction <add>, %31, %cst_16 [1] : vector<8x16xf32> to vector<8xf32>
    %33 = vector.shape_cast %32 : vector<8xf32> to vector<8x1xf32>
    %34 = arith.addf %17, %33 : vector<8x1xf32>
    %35 = arith.mulf %31, %31 : vector<8x16xf32>
    %cst_17 = arith.constant dense<0.000000e+00> : vector<8xf32>
    %36 = vector.multi_reduction <add>, %35, %cst_17 [1] : vector<8x16xf32> to vector<8xf32>
    %37 = vector.shape_cast %36 : vector<8xf32> to vector<8x1xf32>
    %38 = arith.addf %21, %37 : vector<8x1xf32>
    %c0_18 = arith.constant 0 : index
    %c0_19 = arith.constant 0 : index
    %c0_20 = arith.constant 0 : index
    %39 = vector.load %arg4[%c0_18, %c0_19, %c0_20] : memref<2x8x1xf32, #tpu.memory_space<vmem>>, vector<1x8x1xf32>
    %40 = vector.shape_cast %39 : vector<1x8x1xf32> to vector<8x1xf32>
    %41 = arith.addf %40, %34 : vector<8x1xf32>
    %c0_21 = arith.constant 0 : index
    %c0_22 = arith.constant 0 : index
    %c0_23 = arith.constant 0 : index
    %42 = vector.load %arg4[%c0_21, %c0_22, %c0_23] : memref<2x8x1xf32, #tpu.memory_space<vmem>>, vector<1x8x1xf32>
    %43 = vector.shape_cast %42 : vector<1x8x1xf32> to vector<8x1xf32>
    %44 = vector.shape_cast %41 : vector<8x1xf32> to vector<1x8x1xf32>
    tpu.vector_store %arg4[%c0_21, %c0_22, %c0_23], %44 {strides = array<i32>} : memref<2x8x1xf32, #tpu.memory_space<vmem>>, vector<1x8x1xf32>,
    %c1_24 = arith.constant 1 : index
    %c0_25 = arith.constant 0 : index
    %c0_26 = arith.constant 0 : index
    %45 = vector.load %arg4[%c1_24, %c0_25, %c0_26] : memref<2x8x1xf32, #tpu.memory_space<vmem>>, vector<1x8x1xf32>
    %46 = vector.shape_cast %45 : vector<1x8x1xf32> to vector<8x1xf32>
    %47 = arith.addf %46, %38 : vector<8x1xf32>
    %c1_27 = arith.constant 1 : index
    %c0_28 = arith.constant 0 : index
    %c0_29 = arith.constant 0 : index
    %48 = vector.load %arg4[%c1_27, %c0_28, %c0_29] : memref<2x8x1xf32, #tpu.memory_space<vmem>>, vector<1x8x1xf32>
    %49 = vector.shape_cast %48 : vector<1x8x1xf32> to vector<8x1xf32>
    %50 = vector.shape_cast %47 : vector<8x1xf32> to vector<1x8x1xf32>
    tpu.vector_store %arg4[%c1_27, %c0_28, %c0_29], %50 {strides = array<i32>} : memref<2x8x1xf32, #tpu.memory_space<vmem>>, vector<1x8x1xf32>,
    %c0_i32_30 = arith.constant 0 : i32
    %51 = arith.cmpi eq, %arg0, %c0_i32_30 : i32
    %52 = arith.extui %51 : i1 to i32
    %c0_i32_31 = arith.constant 0 : i32
    %53 = arith.cmpi ne, %52, %c0_i32_31 : i32
    scf.if %53 {
      %c0_32 = arith.constant 0 : index
      %c0_33 = arith.constant 0 : index
      %c0_34 = arith.constant 0 : index
      %54 = vector.load %arg4[%c0_32, %c0_33, %c0_34] : memref<2x8x1xf32, #tpu.memory_space<vmem>>, vector<1x8x1xf32>
      %55 = vector.shape_cast %54 : vector<1x8x1xf32> to vector<8x1xf32>
      %cst_35 = arith.constant 3.125000e-02 : f32
      %56 = vector.broadcast %cst_35 : f32 to vector<8x1xf32>
      %57 = arith.mulf %55, %56 : vector<8x1xf32>
      %c1_36 = arith.constant 1 : index
      %c0_37 = arith.constant 0 : index
      %c0_38 = arith.constant 0 : index
      %58 = vector.load %arg4[%c1_36, %c0_37, %c0_38] : memref<2x8x1xf32, #tpu.memory_space<vmem>>, vector<1x8x1xf32>
      %59 = vector.shape_cast %58 : vector<1x8x1xf32> to vector<8x1xf32>
      %cst_39 = arith.constant 3.125000e-02 : f32
      %60 = vector.broadcast %cst_39 : f32 to vector<8x1xf32>
      %61 = arith.mulf %59, %60 : vector<8x1xf32>
      %62 = arith.mulf %57, %57 : vector<8x1xf32>
      %63 = arith.subf %61, %62 : vector<8x1xf32>
      %cst_40 = arith.constant 0.000000e+00 : f32
      %64 = vector.broadcast %cst_40 : f32 to vector<8x1xf32>
      %65 = arith.maximumf %63, %64 : vector<8x1xf32>
      %c0_41 = arith.constant 0 : index
      %c0_42 = arith.constant 0 : index
      %c0_43 = arith.constant 0 : index
      %66 = vector.load %arg3[%c0_41, %c0_42, %c0_43] : memref<2x8x1xf32, #tpu.memory_space<vmem>>, vector<1x8x1xf32>
      %67 = vector.shape_cast %66 : vector<1x8x1xf32> to vector<8x1xf32>
      %cst_44 = arith.constant 9.99999974E-6 : f32
      %68 = vector.broadcast %cst_44 : f32 to vector<8x1xf32>
      %69 = arith.addf %65, %68 : vector<8x1xf32>
      %70 = math.rsqrt %69 : vector<8x1xf32>
      %71 = arith.mulf %67, %70 : vector<8x1xf32>
      %c0_45 = arith.constant 0 : index
      %c0_46 = arith.constant 0 : index
      %c0_47 = arith.constant 0 : index
      %72 = vector.load %arg4[%c0_45, %c0_46, %c0_47] : memref<2x8x1xf32, #tpu.memory_space<vmem>>, vector<1x8x1xf32>
      %73 = vector.shape_cast %72 : vector<1x8x1xf32> to vector<8x1xf32>
      %74 = vector.shape_cast %71 : vector<8x1xf32> to vector<1x8x1xf32>
      tpu.vector_store %arg4[%c0_45, %c0_46, %c0_47], %74 {strides = array<i32>} : memref<2x8x1xf32, #tpu.memory_space<vmem>>, vector<1x8x1xf32>,
      %c1_48 = arith.constant 1 : index
      %c0_49 = arith.constant 0 : index
      %c0_50 = arith.constant 0 : index
      %75 = vector.load %arg3[%c1_48, %c0_49, %c0_50] : memref<2x8x1xf32, #tpu.memory_space<vmem>>, vector<1x8x1xf32>
      %76 = vector.shape_cast %75 : vector<1x8x1xf32> to vector<8x1xf32>
      %77 = arith.mulf %57, %71 : vector<8x1xf32>
      %78 = arith.subf %76, %77 : vector<8x1xf32>
      %c1_51 = arith.constant 1 : index
      %c0_52 = arith.constant 0 : index
      %c0_53 = arith.constant 0 : index
      %79 = vector.load %arg4[%c1_51, %c0_52, %c0_53] : memref<2x8x1xf32, #tpu.memory_space<vmem>>, vector<1x8x1xf32>
      %80 = vector.shape_cast %79 : vector<1x8x1xf32> to vector<8x1xf32>
      %81 = vector.shape_cast %78 : vector<8x1xf32> to vector<1x8x1xf32>
      tpu.vector_store %arg4[%c1_51, %c0_52, %c0_53], %81 {strides = array<i32>} : memref<2x8x1xf32, #tpu.memory_space<vmem>>, vector<1x8x1xf32>,
    } else {
    }
    return
  }
  func.func @transform_0(%arg0: i32) -> (i32, i32, i32) {
    %c0_i32 = arith.constant 0 : i32
    %c0_i32_0 = arith.constant 0 : i32
    %c0_i32_1 = arith.constant 0 : i32
    return %arg0, %c0_i32, %c0_i32_0 : i32, i32, i32
  }
  func.func @transform_1(%arg0: i32) -> (i32, i32) {
    %c0_i32 = arith.constant 0 : i32
    %c0_i32_0 = arith.constant 0 : i32
    %c0_i32_1 = arith.constant 0 : i32
    return %c0_i32, %c0_i32_0 : i32, i32
  }
  func.func @transform_2(%arg0: i32) -> (i32, i32, i32) {
    %c0_i32 = arith.constant 0 : i32
    %c0_i32_0 = arith.constant 0 : i32
    %c0_i32_1 = arith.constant 0 : i32
    %c0_i32_2 = arith.constant 0 : i32
    return %c0_i32, %c0_i32_0, %c0_i32_1 : i32, i32, i32
  }
  func.func @transform_3(%arg0: i32) -> (i32, i32, i32) {
    %c0_i32 = arith.constant 0 : i32
    %c0_i32_0 = arith.constant 0 : i32
    %c0_i32_1 = arith.constant 0 : i32
    %c0_i32_2 = arith.constant 0 : i32
    return %c0_i32, %c0_i32_0, %c0_i32_1 : i32, i32, i32
  }
}

</mosaic_0001>

<llo_original>
// kernel: tpu_custom_call.1
$region0: #{tpu_custom_call.1}
  #allocation0 [shape = 'u32[]', space=smem, size = 0x4, offset = 0x4, fixed_abs, tag = 'smem constant byte address 0x4 - core index']
  #allocation1 [shape = 'u32[144,128]{1,0:T(1,128)}', space=vmem, size = 0x12000, scoped, tag = 'internal scratch']
  %s0 = inlined_call_operand.vmem [shape: f32[2,4,16], index: 0, kind: input, shape index: {}]
  %s1 = inlined_call_operand.vmem [shape: f32[8,12], index: 1, kind: input, shape index: {}]
  %s2 = inlined_call_operand.vmem [shape: f32[2,8,1], index: 2, kind: input, shape index: {}]
  %s3 = inlined_call_operand.vmem [shape: f32[2,8,1], index: 3, kind: output, shape index: {}]
  %s4 = sld [smem:[#allocation0]]
  $region30: #{tpu_custom_call.1} parent=0
    _
  %s6 = ssub.s32 1, %s4
  %s7 = scalar_select 0, %s6, %s4
  // Predicated region
  $region2: #{tpu_custom_call.1} parent=0 // pred_check
    _
  $region3: #{tpu_custom_call.1} parent=0 // pred_check_branch
    %9 = sbr.rel (0) target = $region5
  $region4: #{tpu_custom_call.1} parent=0 // pred_region
    _
  $region5: #{tpu_custom_call.1} parent=0 // pred_fallthru
    _
  // Predicated region
  $region6: #{tpu_custom_call.1} parent=0 // pred_check
    _
  $region7: #{tpu_custom_call.1} parent=0 // pred_check_branch
    %11 = sbr.rel (0) target = $region9
  $region8: #{tpu_custom_call.1} parent=0 // pred_region
    _
  $region9: #{tpu_custom_call.1} parent=0 // pred_fallthru
    _
  // Predicated region
  $region10: #{tpu_custom_call.1} parent=0 // pred_check
    _
  $region11: #{tpu_custom_call.1} parent=0 // pred_check_branch
    %13 = sbr.rel (0) target = $region13
  $region12: #{tpu_custom_call.1} parent=0 // pred_region
    _
  $region13: #{tpu_custom_call.1} parent=0 // pred_fallthru
    _
  %p14 = scmp.eq.s32.totalorder 0, 0
  // Predicated region
  $region14: #{tpu_custom_call.1} parent=0 // pred_check
    %p15 = pneg %p14
  $region15: #{tpu_custom_call.1} parent=0 // pred_check_branch
    %17 = sbr.rel (%p15) target = $region17
  $region16: #{tpu_custom_call.1} parent=0 // pred_region
    %vm18 = vcmask 7168
    %19 = vst.msk [vmem:[%s3] sm:$0xff] %vm18, 0.0
    %20 = vst.msk [vmem:[%s3 + $0x8] sm:$0xff] %vm18, 0.0
  $region17: #{tpu_custom_call.1} parent=0 // pred_fallthru
    _
  %v21 = vld [vmem:[%s1] sm:$0xff]
  %v22 = vld [vmem:[%s0] sm:$0xf]
  %24 = vrot.lane.b32.xlu0 %v22, 1
  %v25 = vpop.permute.xlu0 %24
  %vm27 = vcmask 7168
  %v28 = vsel %vm27, 0.0, %v25
  %29 = vrot.lane.b32.xlu0 %v22, 127
  %v30 = vpop.permute.xlu0 %29
  %vm32 = vcmask 121856
  %v33 = vsel %vm32, %v30, 0.0
  %v34 = vrot.slane %v22, 4
  %vm36 = vcmask 1043456
  %v37 = vsel %vm36, %v28, %v34
  %vm38 = vcmask 97280
  %v40 = vsel %vm38, %v21, 0
  %v43 = vsel %vm36, %v33, 0
  %45 = vmatprep.subr.mxu0 0.0
  %46 = vmatpush1.msra.mxu0 %v37
  %47 = vmatprep.subr.mxu0 0.0
  %48 = vmatpush1.msra.mxu0 %v43
  %49 = vmatprep.subr.mxu0 0.0
  %50 = vmatpush1.msra.mxu0 0.0
  %51 = vmatprep.subr.mxu0 0.0
  %52 = vmatpush1.msra.mxu0 0.0
  %53 = vmatprep.subr.mxu0 0.0
  %54 = vmatpush1.msra.mxu0 0.0
  %55 = vmatprep.subr.mxu0 0.0
  %56 = vmatpush1.msra.mxu0 0.0
  %57 = vmatprep.subr.mxu0 0.0
  %58 = vmatpush1.msra.mxu0 0.0
  %59 = vmatprep.subr.mxu0 0.0
  %60 = vmatpush1.msra.mxu0 0.0
  %61 = vmatprep.subr.mxu0 0.0
  %62 = vmatpush1.msra.mxu0 0.0
  %63 = vmatprep.subr.mxu0 0.0
  %64 = vmatpush1.msra.mxu0 0.0
  %65 = vmatprep.subr.mxu0 0.0
  %66 = vmatpush1.msra.mxu0 0.0
  %67 = vmatprep.subr.mxu0 0.0
  %68 = vmatpush1.msra.mxu0 0.0
  %69 = vmatprep.subr.mxu0 0.0
  %70 = vmatpush1.msra.mxu0 0.0
  %71 = vmatprep.subr.mxu0 0.0
  %72 = vmatpush1.msra.mxu0 0.0
  %73 = vmatprep.subr.mxu0 0.0
  %74 = vmatpush1.msra.mxu0 0.0
  %75 = vmatprep.subr.mxu0 0.0
  %76 = vmatpush1.msra.mxu0 0.0
  %77 = vmatprep.subr.mxu0 0.0
  %78 = vmatpush1.msra.mxu0 0.0
  %79 = vmatprep.subr.mxu0 0.0
  %80 = vmatpush1.msra.mxu0 0.0
  %81 = vmatprep.subr.mxu0 0.0
  %82 = vmatpush1.msra.mxu0 0.0
  %83 = vmatprep.subr.mxu0 0.0
  %84 = vmatpush1.msra.mxu0 0.0
  %85 = vmatprep.subr.mxu0 0.0
  %86 = vmatpush1.msra.mxu0 0.0
  %87 = vmatprep.subr.mxu0 0.0
  %88 = vmatpush1.msra.mxu0 0.0
  %89 = vmatprep.subr.mxu0 0.0
  %90 = vmatpush1.msra.mxu0 0.0
  %91 = vmatprep.subr.mxu0 0.0
  %92 = vmatpush1.msra.mxu0 0.0
  %93 = vmatprep.subr.mxu0 0.0
  %94 = vmatpush1.msra.mxu0 0.0
  %95 = vmatprep.subr.mxu0 0.0
  %96 = vmatpush1.msra.mxu0 0.0
  %97 = vmatprep.subr.mxu0 0.0
  %98 = vmatpush1.msra.mxu0 0.0
  %99 = vmatprep.subr.mxu0 0.0
  %100 = vmatpush1.msra.mxu0 0.0
  %101 = vmatprep.subr.mxu0 0.0
  %102 = vmatpush1.msra.mxu0 0.0
  %103 = vmatprep.subr.mxu0 0.0
  %104 = vmatpush1.msra.mxu0 0.0
  %105 = vmatprep.subr.mxu0 0.0
  %106 = vmatpush1.msra.mxu0 0.0
  %107 = vmatprep.subr.mxu0 0.0
  %108 = vmatpush1.msra.mxu0 0.0
  %109 = vmatprep.mubr.f32.mxu0 0.0
  %110 = vmatmul.mubr.f32.gmra.mrb[0].mxu0 %v40
  %v111 = vpop.f32.mrb[0].mxu0
  %v112 = vadd.f32 0.0, %v111
  %v113 = vpop.f32.mrb[0].mxu0
  %114 = vdwg.mxu0
  %vm115 = vcmask 130048
  %v116 = vsel %vm115, %v112, 0.0
  %117 = vadd.xlane.f32.xlu0 %v116
  %v118 = vpop.xlane.xlu0 %117
  %v119 = vadd.f32 %v118, 0.0
  %v120 = vmul.f32 %v112, %v112
  %v121 = vsel %vm115, %v120, 0.0
  %122 = vadd.xlane.f32.xlu0 %v121
  %v123 = vpop.xlane.xlu0 %122
  %v124 = vadd.f32 %v123, 0.0
  %s125 = scalar_lea.vmem %s0, 4
  %v126 = vld [vmem:[%s125] sm:$0xf]
  %128 = vrot.lane.b32.xlu0 %v126, 1
  %v129 = vpop.permute.xlu0 %128
  %v131 = vsel %vm27, 0.0, %v129
  %132 = vrot.lane.b32.xlu0 %v126, 127
  %v133 = vpop.permute.xlu0 %132
  %v135 = vsel %vm32, %v133, 0.0
  %v136 = vrot.slane %v126, 4
  %v138 = vsel %vm36, %v131, %v136
  %v140 = vsel %vm36, %v135, 0
  %142 = vmatprep.subr.mxu0 0.0
  %143 = vmatpush1.msra.mxu0 %v138
  %144 = vmatprep.subr.mxu0 0.0
  %145 = vmatpush1.msra.mxu0 %v140
  %146 = vmatprep.subr.mxu0 0.0
  %147 = vmatpush1.msra.mxu0 0.0
  %148 = vmatprep.subr.mxu0 0.0
  %149 = vmatpush1.msra.mxu0 0.0
  %150 = vmatprep.subr.mxu0 0.0
  %151 = vmatpush1.msra.mxu0 0.0
  %152 = vmatprep.subr.mxu0 0.0
  %153 = vmatpush1.msra.mxu0 0.0
  %154 = vmatprep.subr.mxu0 0.0
  %155 = vmatpush1.msra.mxu0 0.0
  %156 = vmatprep.subr.mxu0 0.0
  %157 = vmatpush1.msra.mxu0 0.0
  %158 = vmatprep.subr.mxu0 0.0
  %159 = vmatpush1.msra.mxu0 0.0
  %160 = vmatprep.subr.mxu0 0.0
  %161 = vmatpush1.msra.mxu0 0.0
  %162 = vmatprep.subr.mxu0 0.0
  %163 = vmatpush1.msra.mxu0 0.0
  %164 = vmatprep.subr.mxu0 0.0
  %165 = vmatpush1.msra.mxu0 0.0
  %166 = vmatprep.subr.mxu0 0.0
  %167 = vmatpush1.msra.mxu0 0.0
  %168 = vmatprep.subr.mxu0 0.0
  %169 = vmatpush1.msra.mxu0 0.0
  %170 = vmatprep.subr.mxu0 0.0
  %171 = vmatpush1.msra.mxu0 0.0
  %172 = vmatprep.subr.mxu0 0.0
  %173 = vmatpush1.msra.mxu0 0.0
  %174 = vmatprep.subr.mxu0 0.0
  %175 = vmatpush1.msra.mxu0 0.0
  %176 = vmatprep.subr.mxu0 0.0
  %177 = vmatpush1.msra.mxu0 0.0
  %178 = vmatprep.subr.mxu0 0.0
  %179 = vmatpush1.msra.mxu0 0.0
  %180 = vmatprep.subr.mxu0 0.0
  %181 = vmatpush1.msra.mxu0 0.0
  %182 = vmatprep.subr.mxu0 0.0
  %183 = vmatpush1.msra.mxu0 0.0
  %184 = vmatprep.subr.mxu0 0.0
  %185 = vmatpush1.msra.mxu0 0.0
  %186 = vmatprep.subr.mxu0 0.0
  %187 = vmatpush1.msra.mxu0 0.0
  %188 = vmatprep.subr.mxu0 0.0
  %189 = vmatpush1.msra.mxu0 0.0
  %190 = vmatprep.subr.mxu0 0.0
  %191 = vmatpush1.msra.mxu0 0.0
  %192 = vmatprep.subr.mxu0 0.0
  %193 = vmatpush1.msra.mxu0 0.0
  %194 = vmatprep.subr.mxu0 0.0
  %195 = vmatpush1.msra.mxu0 0.0
  %196 = vmatprep.subr.mxu0 0.0
  %197 = vmatpush1.msra.mxu0 0.0
  %198 = vmatprep.subr.mxu0 0.0
  %199 = vmatpush1.msra.mxu0 0.0
  %200 = vmatprep.subr.mxu0 0.0
  %201 = vmatpush1.msra.mxu0 0.0
  %202 = vmatprep.subr.mxu0 0.0
  %203 = vmatpush1.msra.mxu0 0.0
  %204 = vmatprep.subr.mxu0 0.0
  %205 = vmatpush1.msra.mxu0 0.0
  %206 = vmatprep.mubr.f32.mxu0 0.0
  %207 = vmatmul.mubr.f32.gmra.mrb[0].mxu0 %v40
  %v208 = vpop.f32.mrb[0].mxu0
  %v209 = vadd.f32 0.0, %v208
  %v210 = vpop.f32.mrb[0].mxu0
  %211 = vdwg.mxu0
  %v212 = vsel %vm115, %v209, 0.0
  %213 = vadd.xlane.f32.xlu0 %v212
  %v214 = vpop.xlane.xlu0 %213
  %v215 = vadd.f32 %v119, %v214
  %v216 = vmul.f32 %v209, %v209
  %v217 = vsel %vm115, %v216, 0.0
  %218 = vadd.xlane.f32.xlu0 %v217
  %v219 = vpop.xlane.xlu0 %218
  %v220 = vadd.f32 %v124, %v219
  %v221 = vld [vmem:[%s3] sm:$0xff]
  %v222 = vadd.f32 %v221, %v215
  %223 = vst.msk [vmem:[%s3] sm:$0xff] %vm27, %v222
  %s224 = scalar_lea.vmem %s3, 8
  %v225 = vld [vmem:[%s224] sm:$0xff]
  %v226 = vadd.f32 %v225, %v220
  %227 = vst.msk [vmem:[%s224] sm:$0xff] %vm27, %v226
  // Predicated region
  $region18: #{tpu_custom_call.1} parent=0 // pred_check
    %p228 = pneg %p14
  $region19: #{tpu_custom_call.1} parent=0 // pred_check_branch
    %230 = sbr.rel (%p228) target = $region21
  $region20: #{tpu_custom_call.1} parent=0 // pred_region
    %v231 = vld [vmem:[%s3] sm:$0xff]
    %v232 = vmul.f32 %v231, 0.03125
    %v233 = vld [vmem:[%s224] sm:$0xff]
    %v234 = vmul.f32 %v233, 0.03125
    %v235 = vmul.f32 %v232, %v232
    %v236 = vsub.f32 %v234, %v235
    %v237 = vmax.f32 %v236, 0.0
    %v238 = vld [vmem:[%s2] sm:$0xff]
    %v239 = vadd.f32 %v237, 1e-05
    %v240 = vrsqrt.pop %v239
    %v241 = vmul.f32 %v238, %v240
    %242 = vst.msk [vmem:[%s3] sm:$0xff] %vm27, %v241
    %s243 = scalar_lea.vmem %s2, 8
    %v244 = vld [vmem:[%s243] sm:$0xff]
    %v245 = vmul.f32 %v232, %v241
    %v246 = vsub.f32 %v244, %v245
    %247 = vst.msk [vmem:[%s224] sm:$0xff] %vm27, %v246
  $region21: #{tpu_custom_call.1} parent=0 // pred_fallthru
    _
  // Predicated region
  $region22: #{tpu_custom_call.1} parent=0 // pred_check
    _
  $region23: #{tpu_custom_call.1} parent=0 // pred_check_branch
    %249 = sbr.rel (0) target = $region25
  $region24: #{tpu_custom_call.1} parent=0 // pred_region
    _
  $region25: #{tpu_custom_call.1} parent=0 // pred_fallthru
    _
  // Predicated region
  $region26: #{tpu_custom_call.1} parent=0 // pred_check
    _
  $region27: #{tpu_custom_call.1} parent=0 // pred_check_branch
    %251 = sbr.rel (0) target = $region29
  $region28: #{tpu_custom_call.1} parent=0 // pred_region
    _
  $region29: #{tpu_custom_call.1} parent=0 // pred_fallthru
    _

</llo_original>
